<compile_context>
chip_gen: v7x
topology: tpu7x:2x2x1
jax: 0.10.0
libtpu: 0.0.40
codegen_flags: <defaults>
</compile_context>

<pallas_src>
import jax
import jax.numpy as jnp
from jax.experimental import pallas as pl
from jax.experimental.pallas import tpu as pltpu

HIDDEN = 256
HEAD_PAD = 128        # lane-dense width of the fused V|A head output
TB_CAP = 1024         # safe under v5e's 16 MiB scoped VMEM; sweep 2048 on v6e/v7x
SPLIT_THRESHOLD = 512 # split one big tile in two so v7x's 2nd TC has work


def dddqn_kernel(x_ref, w1_ref, b1_ref, w2_ref, b2_ref, wh_ref, bh_ref, out_ref):
    # In-kernel cast of the streamed f32 state tile to bf16 for the MXU.
    x = x_ref[...].astype(jnp.bfloat16)

    # Hidden layer 1: Linear + ReLU (MXU matmul, f32 accumulate, f32 VPU max).
    h1 = jnp.dot(x, w1_ref[...], preferred_element_type=jnp.float32)
    h1 = jnp.maximum(h1 + b1_ref[...], 0.0).astype(jnp.bfloat16)

    # Hidden layer 2: Linear + ReLU.
    h2 = jnp.dot(h1, w2_ref[...], preferred_element_type=jnp.float32)
    h2 = jnp.maximum(h2 + b2_ref[...], 0.0).astype(jnp.bfloat16)

    # Fused V|A head: (TB, 256) @ (256, 128) + (1, 128) -> lane-dense bf16 store.
    out = jnp.dot(h2, wh_ref[...], preferred_element_type=jnp.float32) + bh_ref[...]
    out_ref[...] = out.astype(out_ref.dtype)


def _round_up(n, m):
    return ((n + m - 1) // m) * m


def _choose_batch_tile(batch):
    """Pick the batch tile (rows per grid step)."""
    if SPLIT_THRESHOLD <= batch <= TB_CAP:
        # Two grid steps instead of one: the ("parallel",) batch axis can then be
        # sharded across v7x's two TensorCores; harmless on 1-TC chips.
        return _round_up(pl.cdiv(batch, 2), 16)
    # Multiple of 16 keeps bf16 sublane packing whole for tiny batches.
    return min(TB_CAP, _round_up(batch, 16))


def pack_params(params):
    """Fuse/pack raw f32 params (weights stored [in, out]) for the kernel."""
    n_actions = params["wa"].shape[1]
    assert 1 + n_actions <= HEAD_PAD, "n_actions too large for fused head pad"
    wh = jnp.zeros((HIDDEN, HEAD_PAD), jnp.float32)
    wh = wh.at[:, 0:1].set(params["wv"]).at[:, 1:1 + n_actions].set(params["wa"])
    bh = jnp.zeros((1, HEAD_PAD), jnp.float32)
    bh = bh.at[:, 0:1].set(params["bv"]).at[:, 1:1 + n_actions].set(params["ba"])
    return dict(
        w1=params["w1"].astype(jnp.bfloat16),
        b1=params["b1"].astype(jnp.float32),
        w2=params["w2"].astype(jnp.bfloat16),
        b2=params["b2"].astype(jnp.float32),
        wh=wh.astype(jnp.bfloat16),
        bh=bh.astype(jnp.float32),
        n_actions=n_actions,
    )


def dueling_dqn_forward(x, packed):
    """x: [batch, in_dim] float32; packed: output of pack_params. Returns (V, A)."""
    batch, in_dim = x.shape
    n_actions = packed["n_actions"]

    tb = _choose_batch_tile(batch)
    grid = (pl.cdiv(batch, tb),)  # partial last block handled (masked) by Pallas

    resident = dict(pipeline_mode=pl.Buffered(1))  # weights/biases stay VMEM-resident

    out = pl.pallas_call(
        dddqn_kernel,
        out_shape=jax.ShapeDtypeStruct((batch, HEAD_PAD), jnp.bfloat16),
        grid_spec=pltpu.PrefetchScalarGridSpec(
            num_scalar_prefetch=0,
            grid=grid,
            in_specs=[
                pl.BlockSpec((tb, in_dim), lambda i: (i, 0)),                    # x tile (streamed, double-buffered)
                pl.BlockSpec((in_dim, HIDDEN), lambda i: (0, 0), **resident),    # w1
                pl.BlockSpec((1, HIDDEN), lambda i: (0, 0), **resident),         # b1
                pl.BlockSpec((HIDDEN, HIDDEN), lambda i: (0, 0), **resident),    # w2
                pl.BlockSpec((1, HIDDEN), lambda i: (0, 0), **resident),         # b2
                pl.BlockSpec((HIDDEN, HEAD_PAD), lambda i: (0, 0), **resident),  # fused head W
                pl.BlockSpec((1, HEAD_PAD), lambda i: (0, 0), **resident),       # fused head b
            ],
            out_specs=pl.BlockSpec((tb, HEAD_PAD), lambda i: (i, 0)),
        ),
        compiler_params=pltpu.CompilerParams(
            # 2 TCs on v7x (consider pltpu.CORE_PARALLEL there), no-op elsewhere.
            dimension_semantics=("parallel",)),
    )(x, packed["w1"], packed["b1"], packed["w2"], packed["b2"],
      packed["wh"], packed["bh"])

    # One slice of the slab; split V/A on the tiny (batch, 1+n_actions) result.
    va = out[:, :1 + n_actions].astype(jnp.float32)
    return va[:, 0:1], va[:, 1:1 + n_actions]


def init_params(key, in_dim, hidden, n_actions):
    """Mimics PyTorch Linear default init (uniform +/- 1/sqrt(fan_in)).
    Weights stored as [in_features, out_features] (pre-transposed)."""
    def linear(key, fan_in, fan_out):
        kw, kb = jax.random.split(key)
        bound = 1.0 / jnp.sqrt(fan_in)
        w = jax.random.uniform(kw, (fan_in, fan_out), jnp.float32, -bound, bound)
        b = jax.random.uniform(kb, (1, fan_out), jnp.float32, -bound, bound)
        return w, b

    k1, k2, k3, k4 = jax.random.split(key, 4)
    w1, b1 = linear(k1, in_dim, hidden)
    w2, b2 = linear(k2, hidden, hidden)
    wv, bv = linear(k3, hidden, 1)
    wa, ba = linear(k4, hidden, n_actions)
    return dict(w1=w1, b1=b1, w2=w2, b2=b2, wv=wv, bv=bv, wa=wa, ba=ba)


if __name__ == "__main__":
    # TODO(synk): optimizer (Adam) and MSELoss from the PyTorch module are
    # training-time objects, not part of the forward pass; not implemented here.
    key = jax.random.PRNGKey(0)
    k_x, k_p = jax.random.split(key)

    batch = 32
    in_dim = 32       # input_shape = (32,)
    hidden = HIDDEN
    n_actions = 4

    x = jax.random.normal(k_x, (batch, in_dim), jnp.float32)
    params = init_params(k_p, in_dim, hidden, n_actions)
    packed = pack_params(params)

    v, a = dueling_dqn_forward(x, packed)
    jax.block_until_ready((v, a))
    assert v.shape == (batch, 1) and a.shape == (batch, n_actions)

    # Reference 1: same bf16-weight math in pure JAX (tight tolerance).
    xb = x.astype(jnp.bfloat16)
    h1 = jnp.maximum(jnp.dot(xb, packed["w1"], preferred_element_type=jnp.float32)
                     + packed["b1"], 0.0).astype(jnp.bfloat16)
    h2 = jnp.maximum(jnp.dot(h1, packed["w2"], preferred_element_type=jnp.float32)
                     + packed["b2"], 0.0).astype(jnp.bfloat16)
    out_ref = jnp.dot(h2, packed["wh"], preferred_element_type=jnp.float32) + packed["bh"]
    assert jnp.allclose(v, out_ref[:, 0:1], atol=5e-3), "V head mismatch (bf16 ref)"
    assert jnp.allclose(a, out_ref[:, 1:1 + n_actions], atol=5e-3), "A head mismatch (bf16 ref)"

    # Reference 2: original f32 PyTorch-equivalent math (loose tolerance).
    h1f = jnp.maximum(x @ params["w1"] + params["b1"], 0.0)
    h2f = jnp.maximum(h1f @ params["w2"] + params["b2"], 0.0)
    v_f32 = h2f @ params["wv"] + params["bv"]
    a_f32 = h2f @ params["wa"] + params["ba"]
    assert jnp.allclose(v, v_f32, atol=1e-1), "V head mismatch (f32 ref)"
    assert jnp.allclose(a, a_f32, atol=1e-1), "A head mismatch (f32 ref)"

    print("KERNEL_OK")
</pallas_src>

<mosaic_0001>
module attributes {stable_mosaic.version = 11 : i64} {
  func.func @dddqn_kernel(%arg0: i32, %arg1: memref<32x32xf32, #tpu.memory_space<vmem>>, %arg2: memref<32x256xbf16, #tpu.memory_space<vmem>>, %arg3: memref<1x256xf32, #tpu.memory_space<vmem>>, %arg4: memref<256x256xbf16, #tpu.memory_space<vmem>>, %arg5: memref<1x256xf32, #tpu.memory_space<vmem>>, %arg6: memref<256x128xbf16, #tpu.memory_space<vmem>>, %arg7: memref<1x128xf32, #tpu.memory_space<vmem>>, %arg8: memref<32x128xbf16, #tpu.memory_space<vmem>>) attributes {dimension_semantics = [#tpu.dimension_semantics<parallel>], iteration_bounds = array<i64: 1>, scalar_prefetch = 0 : i64, scratch_operands = 0 : i64, tpu.core_type = #tpu.core_type<tc>, window_params = [{transform_indices = @transform_0, window_bounds = array<i64: 32, 32>}, {pipeline_mode = #tpu.pipeline_mode<synchronous>, transform_indices = @transform_1, window_bounds = array<i64: 32, 256>}, {pipeline_mode = #tpu.pipeline_mode<synchronous>, transform_indices = @transform_2, window_bounds = array<i64: 1, 256>}, {pipeline_mode = #tpu.pipeline_mode<synchronous>, transform_indices = @transform_3, window_bounds = array<i64: 256, 256>}, {pipeline_mode = #tpu.pipeline_mode<synchronous>, transform_indices = @transform_4, window_bounds = array<i64: 1, 256>}, {pipeline_mode = #tpu.pipeline_mode<synchronous>, transform_indices = @transform_5, window_bounds = array<i64: 256, 128>}, {pipeline_mode = #tpu.pipeline_mode<synchronous>, transform_indices = @transform_6, window_bounds = array<i64: 1, 128>}, {transform_indices = @transform_7, window_bounds = array<i64: 32, 128>}]} {
    %c0 = arith.constant 0 : index
    %c0_0 = arith.constant 0 : index
    %0 = vector.load %arg1[%c0, %c0_0] : memref<32x32xf32, #tpu.memory_space<vmem>>, vector<32x32xf32>
    %1 = arith.truncf %0 : vector<32x32xf32> to vector<32x32xbf16>
    %c0_1 = arith.constant 0 : index
    %c0_2 = arith.constant 0 : index
    %2 = vector.load %arg2[%c0_1, %c0_2] : memref<32x256xbf16, #tpu.memory_space<vmem>>, vector<32x256xbf16>
    %cst = arith.constant dense<0.000000e+00> : vector<32x256xf32>
    %3 = tpu.matmul %1, %2, %cst {dimension_numbers = #tpu.dot_dimension_numbers<[1], [0], [0], [1], [0, 0, 1, 1], [], []>} : vector<32x32xbf16>, vector<32x256xbf16>, vector<32x256xf32> -> vector<32x256xf32>
    %c0_3 = arith.constant 0 : index
    %c0_4 = arith.constant 0 : index
    %4 = vector.load %arg3[%c0_3, %c0_4] : memref<1x256xf32, #tpu.memory_space<vmem>>, vector<1x256xf32>
    %5 = vector.broadcast %4 : vector<1x256xf32> to vector<32x256xf32>
    %6 = arith.addf %3, %5 : vector<32x256xf32>
    %cst_5 = arith.constant 0.000000e+00 : f32
    %7 = vector.broadcast %cst_5 : f32 to vector<32x256xf32>
    %8 = arith.maximumf %6, %7 : vector<32x256xf32>
    %9 = arith.truncf %8 : vector<32x256xf32> to vector<32x256xbf16>
    %c0_6 = arith.constant 0 : index
    %c0_7 = arith.constant 0 : index
    %10 = vector.load %arg4[%c0_6, %c0_7] : memref<256x256xbf16, #tpu.memory_space<vmem>>, vector<256x256xbf16>
    %cst_8 = arith.constant dense<0.000000e+00> : vector<32x256xf32>
    %11 = tpu.matmul %9, %10, %cst_8 {dimension_numbers = #tpu.dot_dimension_numbers<[1], [0], [0], [1], [0, 0, 1, 1], [], []>} : vector<32x256xbf16>, vector<256x256xbf16>, vector<32x256xf32> -> vector<32x256xf32>
    %c0_9 = arith.constant 0 : index
    %c0_10 = arith.constant 0 : index
    %12 = vector.load %arg5[%c0_9, %c0_10] : memref<1x256xf32, #tpu.memory_space<vmem>>, vector<1x256xf32>
    %13 = vector.broadcast %12 : vector<1x256xf32> to vector<32x256xf32>
    %14 = arith.addf %11, %13 : vector<32x256xf32>
    %cst_11 = arith.constant 0.000000e+00 : f32
    %15 = vector.broadcast %cst_11 : f32 to vector<32x256xf32>
    %16 = arith.maximumf %14, %15 : vector<32x256xf32>
    %17 = arith.truncf %16 : vector<32x256xf32> to vector<32x256xbf16>
    %c0_12 = arith.constant 0 : index
    %c0_13 = arith.constant 0 : index
    %18 = vector.load %arg6[%c0_12, %c0_13] : memref<256x128xbf16, #tpu.memory_space<vmem>>, vector<256x128xbf16>
    %cst_14 = arith.constant dense<0.000000e+00> : vector<32x128xf32>
    %19 = tpu.matmul %17, %18, %cst_14 {dimension_numbers = #tpu.dot_dimension_numbers<[1], [0], [0], [1], [0, 0, 1, 1], [], []>} : vector<32x256xbf16>, vector<256x128xbf16>, vector<32x128xf32> -> vector<32x128xf32>
    %c0_15 = arith.constant 0 : index
    %c0_16 = arith.constant 0 : index
    %20 = vector.load %arg7[%c0_15, %c0_16] : memref<1x128xf32, #tpu.memory_space<vmem>>, vector<1x128xf32>
    %21 = vector.broadcast %20 : vector<1x128xf32> to vector<32x128xf32>
    %22 = arith.addf %19, %21 : vector<32x128xf32>
    %23 = arith.truncf %22 : vector<32x128xf32> to vector<32x128xbf16>
    %c0_17 = arith.constant 0 : index
    %c0_18 = arith.constant 0 : index
    %24 = vector.load %arg8[%c0_17, %c0_18] : memref<32x128xbf16, #tpu.memory_space<vmem>>, vector<32x128xbf16>
    tpu.vector_store %arg8[%c0_17, %c0_18], %23 {strides = array<i32>} : memref<32x128xbf16, #tpu.memory_space<vmem>>, vector<32x128xbf16>,
    return
  }
  func.func @transform_0(%arg0: i32) -> (i32, i32) {
    %c0_i32 = arith.constant 0 : i32
    %c0_i32_0 = arith.constant 0 : i32
    return %arg0, %c0_i32 : i32, i32
  }
  func.func @transform_1(%arg0: i32) -> (i32, i32) {
    %c0_i32 = arith.constant 0 : i32
    %c0_i32_0 = arith.constant 0 : i32
    %c0_i32_1 = arith.constant 0 : i32
    return %c0_i32, %c0_i32_0 : i32, i32
  }
  func.func @transform_2(%arg0: i32) -> (i32, i32) {
    %c0_i32 = arith.constant 0 : i32
    %c0_i32_0 = arith.constant 0 : i32
    %c0_i32_1 = arith.constant 0 : i32
    return %c0_i32, %c0_i32_0 : i32, i32
  }
  func.func @transform_3(%arg0: i32) -> (i32, i32) {
    %c0_i32 = arith.constant 0 : i32
    %c0_i32_0 = arith.constant 0 : i32
    %c0_i32_1 = arith.constant 0 : i32
    return %c0_i32, %c0_i32_0 : i32, i32
  }
  func.func @transform_4(%arg0: i32) -> (i32, i32) {
    %c0_i32 = arith.constant 0 : i32
    %c0_i32_0 = arith.constant 0 : i32
    %c0_i32_1 = arith.constant 0 : i32
    return %c0_i32, %c0_i32_0 : i32, i32
  }
  func.func @transform_5(%arg0: i32) -> (i32, i32) {
    %c0_i32 = arith.constant 0 : i32
    %c0_i32_0 = arith.constant 0 : i32
    %c0_i32_1 = arith.constant 0 : i32
    return %c0_i32, %c0_i32_0 : i32, i32
  }
  func.func @transform_6(%arg0: i32) -> (i32, i32) {
    %c0_i32 = arith.constant 0 : i32
    %c0_i32_0 = arith.constant 0 : i32
    %c0_i32_1 = arith.constant 0 : i32
    return %c0_i32, %c0_i32_0 : i32, i32
  }
  func.func @transform_7(%arg0: i32) -> (i32, i32) {
    %c0_i32 = arith.constant 0 : i32
    %c0_i32_0 = arith.constant 0 : i32
    return %arg0, %c0_i32 : i32, i32
  }
}

</mosaic_0001>

<llo_original>
// kernel: tpu_custom_call.1
$region0: #{tpu_custom_call.1}
  #allocation0 [shape = 'u32[]', space=smem, size = 0x4, offset = 0x4, fixed_abs, tag = 'smem constant byte address 0x4 - core index']
  #allocation1 [shape = 'u32[144,128]{1,0:T(1,128)}', space=vmem, size = 0x12000, scoped, tag = 'internal scratch']
  %s0 = inlined_call_operand.hbm [shape: f32[32,32], index: 0, kind: input, shape index: {}]
  %s1 = inlined_call_operand.hbm [shape: bf16[32,256], index: 1, kind: input, shape index: {}]
  %s2 = inlined_call_operand.vmem [shape: f32[1,256], index: 2, kind: input, shape index: {}]
  %s3 = inlined_call_operand.hbm [shape: bf16[256,256], index: 3, kind: input, shape index: {}]
  %s4 = inlined_call_operand.vmem [shape: f32[1,256], index: 4, kind: input, shape index: {}]
  %s5 = inlined_call_operand.hbm [shape: bf16[256,128], index: 5, kind: input, shape index: {}]
  %s6 = inlined_call_operand.vmem [shape: f32[1,128], index: 6, kind: input, shape index: {}]
  %s7 = inlined_call_operand.hbm [shape: bf16[32,128], index: 7, kind: output, shape index: {}]
  %s8 = sld [smem:[#allocation0]]
  $region54: #{tpu_custom_call.1} parent=0
    _
  %s10 = ssub.s32 1, %s8
  %s11 = scalar_select 0, %s10, %s8
  $region1: #{tpu_custom_call.1} parent=0
    #allocation2 [shape = 'u8[16384]{0}', space=vmem, size = 0x4000, scoped, tag = 'input window, operand 0, single buffered']
    #allocation3 [shape = 's32[1]{0}', space=sflag, size = 0x4, scoped, tag = 'scoped memory for tpu_custom_call.1']
    #allocation4 [shape = 's32[1]{0}', space=sflag, size = 0x4, scoped, tag = 'scoped memory for tpu_custom_call.1']
    #allocation5 [shape = 'u8[16384]{0}', space=vmem, size = 0x4000, scoped, tag = 'input window, operand 1, single buffered']
    #allocation6 [shape = 's32[1]{0}', space=sflag, size = 0x4, scoped, tag = 'scoped memory for tpu_custom_call.1']
    #allocation7 [shape = 'u8[131072]{0}', space=vmem, size = 0x20000, scoped, tag = 'input window, operand 3, single buffered']
    #allocation8 [shape = 'u8[65536]{0}', space=vmem, size = 0x10000, scoped, tag = 'input window, operand 5, single buffered']
    #allocation9 [shape = 's32[1]{0}', space=sflag, size = 0x4, scoped, tag = 'scoped memory for tpu_custom_call.1']
    #allocation10 [shape = 'u8[8192]{0}', space=vmem, size = 0x2000, scoped, tag = 'output window, operand 0, single buffered']
    %12 = vsyncpa [#allocation3], 0
    %13 = vsyncpa [#allocation6], 0
    %14 = vsyncpa [#allocation9], 0
    %15 = vsyncpa [#allocation4], 0
    // Predicated region
    $region2: #{tpu_custom_call.1} parent=1 // pred_check
      _
    $region3: #{tpu_custom_call.1} parent=1 // pred_check_branch
      %17 = sbr.rel (0) target = $region5
    $region4: #{tpu_custom_call.1} parent=1 // pred_region
      %s19 = ssub.s32 512, 512
      %20 = vsyncadd [#allocation3], %s19
      %s21 = sshll.u32 [#allocation2], 4
      %s22 = int_to_ptr.vmem [resolvable:$true] %s21
      %27 = dma.hbm_to_vmem [thread:$0]  %s0, 512, %s22, [#allocation3], 128, 128, 8
    $region5: #{tpu_custom_call.1} parent=1 // pred_fallthru
      _
    // Predicated region
    $region6: #{tpu_custom_call.1} parent=1 // pred_check
      _
    $region7: #{tpu_custom_call.1} parent=1 // pred_check_branch
      %29 = sbr.rel (0) target = $region9
    $region8: #{tpu_custom_call.1} parent=1 // pred_region
      %s31 = ssub.s32 512, 512
      %32 = vsyncadd [#allocation6], %s31
      %s33 = sshll.u32 [#allocation5], 4
      %s34 = int_to_ptr.vmem [resolvable:$true] %s33
      %39 = dma.hbm_to_vmem [thread:$0]  %s1, 512, %s34, [#allocation6], 128, 128, 8
    $region9: #{tpu_custom_call.1} parent=1 // pred_fallthru
      _
    // Predicated region
    $region10: #{tpu_custom_call.1} parent=1 // pred_check
      _
    $region11: #{tpu_custom_call.1} parent=1 // pred_check_branch
      %41 = sbr.rel (0) target = $region13
    $region12: #{tpu_custom_call.1} parent=1 // pred_region
      _
    $region13: #{tpu_custom_call.1} parent=1 // pred_fallthru
      _
    // Predicated region
    $region14: #{tpu_custom_call.1} parent=1 // pred_check
      _
    $region15: #{tpu_custom_call.1} parent=1 // pred_check_branch
      %43 = sbr.rel (0) target = $region17
    $region16: #{tpu_custom_call.1} parent=1 // pred_region
      %s45 = ssub.s32 4096, 4096
      %46 = vsyncadd [#allocation6], %s45
      %s47 = sshll.u32 [#allocation7], 4
      %s48 = int_to_ptr.vmem [resolvable:$true] %s47
      %53 = dma.hbm_to_vmem [thread:$0]  %s3, 4096, %s48, [#allocation6], 128, 128, 8
    $region17: #{tpu_custom_call.1} parent=1 // pred_fallthru
      _
    // Predicated region
    $region18: #{tpu_custom_call.1} parent=1 // pred_check
      _
    $region19: #{tpu_custom_call.1} parent=1 // pred_check_branch
      %55 = sbr.rel (0) target = $region21
    $region20: #{tpu_custom_call.1} parent=1 // pred_region
      _
    $region21: #{tpu_custom_call.1} parent=1 // pred_fallthru
      _
    // Predicated region
    $region22: #{tpu_custom_call.1} parent=1 // pred_check
      _
    $region23: #{tpu_custom_call.1} parent=1 // pred_check_branch
      %57 = sbr.rel (0) target = $region25
    $region24: #{tpu_custom_call.1} parent=1 // pred_region
      %s59 = ssub.s32 2048, 2048
      %60 = vsyncadd [#allocation9], %s59
      %s61 = sshll.u32 [#allocation8], 4
      %s62 = int_to_ptr.vmem [resolvable:$true] %s61
      %67 = dma.hbm_to_vmem [thread:$0]  %s5, 2048, %s62, [#allocation9], 64, 64, 4
    $region25: #{tpu_custom_call.1} parent=1 // pred_fallthru
      _
    // Predicated region
    $region26: #{tpu_custom_call.1} parent=1 // pred_check
      _
    $region27: #{tpu_custom_call.1} parent=1 // pred_check_branch
      %69 = sbr.rel (0) target = $region29
    $region28: #{tpu_custom_call.1} parent=1 // pred_region
      _
    $region29: #{tpu_custom_call.1} parent=1 // pred_fallthru
      _
    // Predicated region
    $region30: #{tpu_custom_call.1} parent=1 // pred_check
      _
    $region31: #{tpu_custom_call.1} parent=1 // pred_check_branch
      %71 = sbr.rel (0) target = $region33
    $region32: #{tpu_custom_call.1} parent=1 // pred_region
      %72 = dma.done [#allocation3], 512
    $region33: #{tpu_custom_call.1} parent=1 // pred_fallthru
      _
    // Predicated region
    $region34: #{tpu_custom_call.1} parent=1 // pred_check
      _
    $region35: #{tpu_custom_call.1} parent=1 // pred_check_branch
      %74 = sbr.rel (0) target = $region37
    $region36: #{tpu_custom_call.1} parent=1 // pred_region
      %75 = dma.done [#allocation6], 512
    $region37: #{tpu_custom_call.1} parent=1 // pred_fallthru
      _
    // Predicated region
    $region38: #{tpu_custom_call.1} parent=1 // pred_check
      _
    $region39: #{tpu_custom_call.1} parent=1 // pred_check_branch
      %77 = sbr.rel (0) target = $region41
    $region40: #{tpu_custom_call.1} parent=1 // pred_region
      %78 = dma.done [#allocation6], 4096
    $region41: #{tpu_custom_call.1} parent=1 // pred_fallthru
      _
    // Predicated region
    $region42: #{tpu_custom_call.1} parent=1 // pred_check
      _
    $region43: #{tpu_custom_call.1} parent=1 // pred_check_branch
      %80 = sbr.rel (0) target = $region45
    $region44: #{tpu_custom_call.1} parent=1 // pred_region
      %81 = dma.done [#allocation9], 2048
    $region45: #{tpu_custom_call.1} parent=1 // pred_fallthru
      _
    %v83 = vld [vmem:[#allocation2] sm:$0xff]
    %v84 = vld [vmem:[#allocation2 + $0x8] sm:$0xff]
    %v85 = vld [vmem:[#allocation2 + $0x10] sm:$0xff]
    %v86 = vld [vmem:[#allocation2 + $0x18] sm:$0xff]
    %v87 = vpack.c.bf16 %v84, %v83
    %v88 = vpack.c.bf16 %v86, %v85
    %v89 = vld [vmem:[#allocation5] sm:$0xff]
    %v90 = vld [vmem:[#allocation5 + $0x8] sm:$0xff]
    %v91 = vld [vmem:[#allocation5 + $0x10] sm:$0xff]
    %v92 = vld [vmem:[#allocation5 + $0x18] sm:$0xff]
    %v93 = vld [vmem:[%s2] sm:$0x3]
    %v95 = vlaneseq
    %v96 = vshrl.u32 %v95, 7
    %v97 = vsub.s32 0, %v96
    %v98 = vrot.slane %v93, %v97
    %v99 = vlaneseq
    %v100 = vshrl.u32 %v99, 7
    %v101 = vsub.s32 1, %v100
    %v102 = vrot.slane %v93, %v101
    %v109 = vunpack.c.l.b16 %v89
    %v110 = vunpack.c.h.b16 %v89
    %v111 = vunpack.c.l.b16 %v90
    %v112 = vunpack.c.h.b16 %v90
    %v113 = vunpack.c.l.b16 %v91
    %v114 = vunpack.c.h.b16 %v91
    %v115 = vunpack.c.l.b16 %v92
    %v116 = vunpack.c.h.b16 %v92
    %v117 = vpack.c.b16 %v111, %v109
    %v118 = vpack.c.b16 %v112, %v110
    %v119 = vpack.c.b16 %v115, %v113
    %v120 = vpack.c.b16 %v116, %v114
    %vm125 = vcmask 261120
    %v127 = vsel %vm125, %v87, 0
    %v130 = vsel %vm125, %v88, 0
    %132 = vmatprep.subr.bf16.mxu0 %v118
    %133 = vmatpush1.bf16.msra.mxu0 %v117
    %134 = vmatprep.subr.bf16.mxu0 %v120
    %135 = vmatpush1.bf16.msra.mxu0 %v119
    %136 = vmatprep.subr.bf16.mxu0 0
    %137 = vmatpush1.bf16.msra.mxu0 0
    %138 = vmatprep.subr.bf16.mxu0 0
    %139 = vmatpush1.bf16.msra.mxu0 0
    %140 = vmatprep.subr.bf16.mxu0 0
    %141 = vmatpush1.bf16.msra.mxu0 0
    %142 = vmatprep.subr.bf16.mxu0 0
    %143 = vmatpush1.bf16.msra.mxu0 0
    %144 = vmatprep.subr.bf16.mxu0 0
    %145 = vmatpush1.bf16.msra.mxu0 0
    %146 = vmatprep.subr.bf16.mxu0 0
    %147 = vmatpush1.bf16.msra.mxu0 0
    %148 = vmatprep.subr.bf16.mxu0 0
    %149 = vmatpush1.bf16.msra.mxu0 0
    %150 = vmatprep.subr.bf16.mxu0 0
    %151 = vmatpush1.bf16.msra.mxu0 0
    %152 = vmatprep.subr.bf16.mxu0 0
    %153 = vmatpush1.bf16.msra.mxu0 0
    %154 = vmatprep.subr.bf16.mxu0 0
    %155 = vmatpush1.bf16.msra.mxu0 0
    %156 = vmatprep.subr.bf16.mxu0 0
    %157 = vmatpush1.bf16.msra.mxu0 0
    %158 = vmatprep.subr.bf16.mxu0 0
    %159 = vmatpush1.bf16.msra.mxu0 0
    %160 = vmatprep.subr.bf16.mxu0 0
    %161 = vmatpush1.bf16.msra.mxu0 0
    %162 = vmatprep.subr.bf16.mxu0 0
    %163 = vmatpush1.bf16.msra.mxu0 0
    %164 = vmatprep.mubr.bf16.mxu0 0
    %165 = vmatmul.mubr.bf16.gmra.mrb[0].mxu0 %v127
    %v166 = vpop.f32.mrb[0].mxu0
    %v167 = vadd.f32 %v98, %v166
    %v168 = vpop.f32.mrb[0].mxu0
    %v169 = vadd.f32 %v102, %v168
    %v170 = vpop.f32.mrb[0].mxu0
    %v171 = vadd.f32 %v98, %v170
    %v172 = vpop.f32.mrb[0].mxu0
    %v173 = vadd.f32 %v102, %v172
    %174 = vmatprep.mubr.bf16.mxu0 0
    %175 = vmatmul.mubr.bf16.gmra.mrb[0].mxu0 %v130
    %v176 = vpop.f32.mrb[0].mxu0
    %v177 = vadd.f32 %v98, %v176
    %v178 = vpop.f32.mrb[0].mxu0
    %v179 = vadd.f32 %v102, %v178
    %v180 = vpop.f32.mrb[0].mxu0
    %v181 = vadd.f32 %v98, %v180
    %v182 = vpop.f32.mrb[0].mxu0
    %v183 = vadd.f32 %v102, %v182
    %184 = vdwg.mxu0
    %v185 = vmax.f32 %v167, 0.0
    %v186 = vmax.f32 %v169, 0.0
    %v187 = vmax.f32 %v171, 0.0
    %v188 = vmax.f32 %v173, 0.0
    %v189 = vmax.f32 %v177, 0.0
    %v190 = vmax.f32 %v179, 0.0
    %v191 = vmax.f32 %v181, 0.0
    %v192 = vmax.f32 %v183, 0.0
    %v193 = vpack.c.bf16 %v187, %v185
    %v194 = vpack.c.bf16 %v188, %v186
    %v195 = vpack.c.bf16 %v191, %v189
    %v196 = vpack.c.bf16 %v192, %v190
    %v197 = vld [vmem:[#allocation7] sm:$0xff]
    %v198 = vld [vmem:[#allocation7 + $0x8] sm:$0xff]
    %v199 = vld [vmem:[#allocation7 + $0x10] sm:$0xff]
    %v200 = vld [vmem:[#allocation7 + $0x18] sm:$0xff]
    %v201 = vld [vmem:[#allocation7 + $0x20] sm:$0xff]
    %v202 = vld [vmem:[#allocation7 + $0x28] sm:$0xff]
    %v203 = vld [vmem:[#allocation7 + $0x30] sm:$0xff]
    %v204 = vld [vmem:[#allocation7 + $0x38] sm:$0xff]
    %v205 = vld [vmem:[#allocation7 + $0x40] sm:$0xff]
    %v206 = vld [vmem:[#allocation7 + $0x48] sm:$0xff]
    %v207 = vld [vmem:[#allocation7 + $0x50] sm:$0xff]
    %v208 = vld [vmem:[#allocation7 + $0x58] sm:$0xff]
    %v209 = vld [vmem:[#allocation7 + $0x60] sm:$0xff]
    %v210 = vld [vmem:[#allocation7 + $0x68] sm:$0xff]
    %v211 = vld [vmem:[#allocation7 + $0x70] sm:$0xff]
    %v212 = vld [vmem:[#allocation7 + $0x78] sm:$0xff]
    %v213 = vld [vmem:[#allocation7 + $0x80] sm:$0xff]
    %v214 = vld [vmem:[#allocation7 + $0x88] sm:$0xff]
    %v215 = vld [vmem:[#allocation7 + $0x90] sm:$0xff]
    %v216 = vld [vmem:[#allocation7 + $0x98] sm:$0xff]
    %v217 = vld [vmem:[#allocation7 + $0xa0] sm:$0xff]
    %v218 = vld [vmem:[#allocation7 + $0xa8] sm:$0xff]
    %v219 = vld [vmem:[#allocation7 + $0xb0] sm:$0xff]
    %v220 = vld [vmem:[#allocation7 + $0xb8] sm:$0xff]
    %v221 = vld [vmem:[#allocation7 + $0xc0] sm:$0xff]
    %v222 = vld [vmem:[#allocation7 + $0xc8] sm:$0xff]
    %v223 = vld [vmem:[#allocation7 + $0xd0] sm:$0xff]
    %v224 = vld [vmem:[#allocation7 + $0xd8] sm:$0xff]
    %v225 = vld [vmem:[#allocation7 + $0xe0] sm:$0xff]
    %v226 = vld [vmem:[#allocation7 + $0xe8] sm:$0xff]
    %v227 = vld [vmem:[#allocation7 + $0xf0] sm:$0xff]
    %v228 = vld [vmem:[#allocation7 + $0xf8] sm:$0xff]
    %v229 = vld [vmem:[%s4] sm:$0x3]
    %v231 = vlaneseq
    %v232 = vshrl.u32 %v231, 7
    %v233 = vsub.s32 0, %v232
    %v234 = vrot.slane %v229, %v233
    %v235 = vlaneseq
    %v236 = vshrl.u32 %v235, 7
    %v237 = vsub.s32 1, %v236
    %v238 = vrot.slane %v229, %v237
    %v273 = vunpack.c.l.b16 %v197
    %v274 = vunpack.c.h.b16 %v197
    %v275 = vunpack.c.l.b16 %v198
    %v276 = vunpack.c.h.b16 %v198
    %v277 = vunpack.c.l.b16 %v199
    %v278 = vunpack.c.h.b16 %v199
    %v279 = vunpack.c.l.b16 %v200
    %v280 = vunpack.c.h.b16 %v200
    %v281 = vunpack.c.l.b16 %v201
    %v282 = vunpack.c.h.b16 %v201
    %v283 = vunpack.c.l.b16 %v202
    %v284 = vunpack.c.h.b16 %v202
    %v285 = vunpack.c.l.b16 %v203
    %v286 = vunpack.c.h.b16 %v203
    %v287 = vunpack.c.l.b16 %v204
    %v288 = vunpack.c.h.b16 %v204
    %v289 = vunpack.c.l.b16 %v205
    %v290 = vunpack.c.h.b16 %v205
    %v291 = vunpack.c.l.b16 %v206
    %v292 = vunpack.c.h.b16 %v206
    %v293 = vunpack.c.l.b16 %v207
    %v294 = vunpack.c.h.b16 %v207
    %v295 = vunpack.c.l.b16 %v208
    %v296 = vunpack.c.h.b16 %v208
    %v297 = vunpack.c.l.b16 %v209
    %v298 = vunpack.c.h.b16 %v209
    %v299 = vunpack.c.l.b16 %v210
    %v300 = vunpack.c.h.b16 %v210
    %v301 = vunpack.c.l.b16 %v211
    %v302 = vunpack.c.h.b16 %v211
    %v303 = vunpack.c.l.b16 %v212
    %v304 = vunpack.c.h.b16 %v212
    %v305 = vunpack.c.l.b16 %v213
    %v306 = vunpack.c.h.b16 %v213
    %v307 = vunpack.c.l.b16 %v214
    %v308 = vunpack.c.h.b16 %v214
    %v309 = vunpack.c.l.b16 %v215
    %v310 = vunpack.c.h.b16 %v215
    %v311 = vunpack.c.l.b16 %v216
    %v312 = vunpack.c.h.b16 %v216
    %v313 = vunpack.c.l.b16 %v217
    %v314 = vunpack.c.h.b16 %v217
    %v315 = vunpack.c.l.b16 %v218
    %v316 = vunpack.c.h.b16 %v218
    %v317 = vunpack.c.l.b16 %v219
    %v318 = vunpack.c.h.b16 %v219
    %v319 = vunpack.c.l.b16 %v220
    %v320 = vunpack.c.h.b16 %v220
    %v321 = vunpack.c.l.b16 %v221
    %v322 = vunpack.c.h.b16 %v221
    %v323 = vunpack.c.l.b16 %v222
    %v324 = vunpack.c.h.b16 %v222
    %v325 = vunpack.c.l.b16 %v223
    %v326 = vunpack.c.h.b16 %v223
    %v327 = vunpack.c.l.b16 %v224
    %v328 = vunpack.c.h.b16 %v224
    %v329 = vunpack.c.l.b16 %v225
    %v330 = vunpack.c.h.b16 %v225
    %v331 = vunpack.c.l.b16 %v226
    %v332 = vunpack.c.h.b16 %v226
    %v333 = vunpack.c.l.b16 %v227
    %v334 = vunpack.c.h.b16 %v227
    %v335 = vunpack.c.l.b16 %v228
    %v336 = vunpack.c.h.b16 %v228
    %v337 = vpack.c.b16 %v275, %v273
    %v338 = vpack.c.b16 %v276, %v274
    %v339 = vpack.c.b16 %v279, %v277
    %v340 = vpack.c.b16 %v280, %v278
    %v341 = vpack.c.b16 %v283, %v281
    %v342 = vpack.c.b16 %v284, %v282
    %v343 = vpack.c.b16 %v287, %v285
    %v344 = vpack.c.b16 %v288, %v286
    %v345 = vpack.c.b16 %v291, %v289
    %v346 = vpack.c.b16 %v292, %v290
    %v347 = vpack.c.b16 %v295, %v293
    %v348 = vpack.c.b16 %v296, %v294
    %v349 = vpack.c.b16 %v299, %v297
    %v350 = vpack.c.b16 %v300, %v298
    %v351 = vpack.c.b16 %v303, %v301
    %v352 = vpack.c.b16 %v304, %v302
    %v353 = vpack.c.b16 %v307, %v305
    %v354 = vpack.c.b16 %v308, %v306
    %v355 = vpack.c.b16 %v311, %v309
    %v356 = vpack.c.b16 %v312, %v310
    %v357 = vpack.c.b16 %v315, %v313
    %v358 = vpack.c.b16 %v316, %v314
    %v359 = vpack.c.b16 %v319, %v317
    %v360 = vpack.c.b16 %v320, %v318
    %v361 = vpack.c.b16 %v323, %v321
    %v362 = vpack.c.b16 %v324, %v322
    %v363 = vpack.c.b16 %v327, %v325
    %v364 = vpack.c.b16 %v328, %v326
    %v365 = vpack.c.b16 %v331, %v329
    %v366 = vpack.c.b16 %v332, %v330
    %v367 = vpack.c.b16 %v335, %v333
    %v368 = vpack.c.b16 %v336, %v334
    %401 = vmatprep.subr.bf16.mxu0 %v338
    %402 = vmatpush1.bf16.msra.mxu0 %v337
    %403 = vmatprep.subr.bf16.mxu0 %v340
    %404 = vmatpush1.bf16.msra.mxu0 %v339
    %405 = vmatprep.subr.bf16.mxu0 %v342
    %406 = vmatpush1.bf16.msra.mxu0 %v341
    %407 = vmatprep.subr.bf16.mxu0 %v344
    %408 = vmatpush1.bf16.msra.mxu0 %v343
    %409 = vmatprep.subr.bf16.mxu0 %v346
    %410 = vmatpush1.bf16.msra.mxu0 %v345
    %411 = vmatprep.subr.bf16.mxu0 %v348
    %412 = vmatpush1.bf16.msra.mxu0 %v347
    %413 = vmatprep.subr.bf16.mxu0 %v350
    %414 = vmatpush1.bf16.msra.mxu0 %v349
    %415 = vmatprep.subr.bf16.mxu0 %v352
    %416 = vmatpush1.bf16.msra.mxu0 %v351
    %417 = vmatprep.subr.bf16.mxu0 %v354
    %418 = vmatpush1.bf16.msra.mxu0 %v353
    %419 = vmatprep.subr.bf16.mxu0 %v356
    %420 = vmatpush1.bf16.msra.mxu0 %v355
    %421 = vmatprep.subr.bf16.mxu0 %v358
    %422 = vmatpush1.bf16.msra.mxu0 %v357
    %423 = vmatprep.subr.bf16.mxu0 %v360
    %424 = vmatpush1.bf16.msra.mxu0 %v359
    %425 = vmatprep.subr.bf16.mxu0 %v362
    %426 = vmatpush1.bf16.msra.mxu0 %v361
    %427 = vmatprep.subr.bf16.mxu0 %v364
    %428 = vmatpush1.bf16.msra.mxu0 %v363
    %429 = vmatprep.subr.bf16.mxu0 %v366
    %430 = vmatpush1.bf16.msra.mxu0 %v365
    %431 = vmatprep.subr.bf16.mxu0 %v368
    %432 = vmatpush1.bf16.msra.mxu0 %v367
    %433 = vmatprep.mubr.bf16.mxu0 %v194
    %434 = vmatmul.mubr.bf16.gmra.mrb[0].mxu0 %v193
    %v435 = vpop.f32.mrb[0].mxu0
    %v436 = vadd.f32 %v234, %v435
    %v437 = vpop.f32.mrb[0].mxu0
    %v438 = vadd.f32 %v238, %v437
    %v439 = vpop.f32.mrb[0].mxu0
    %v440 = vadd.f32 %v234, %v439
    %v441 = vpop.f32.mrb[0].mxu0
    %v442 = vadd.f32 %v238, %v441
    %443 = vmatprep.mubr.bf16.mxu0 %v196
    %444 = vmatmul.mubr.bf16.gmra.mrb[0].mxu0 %v195
    %v445 = vpop.f32.mrb[0].mxu0
    %v446 = vadd.f32 %v234, %v445
    %v447 = vpop.f32.mrb[0].mxu0
    %v448 = vadd.f32 %v238, %v447
    %v449 = vpop.f32.mrb[0].mxu0
    %v450 = vadd.f32 %v234, %v449
    %v451 = vpop.f32.mrb[0].mxu0
    %v452 = vadd.f32 %v238, %v451
    %453 = vdwg.mxu0
    %v454 = vmax.f32 %v436, 0.0
    %v455 = vmax.f32 %v438, 0.0
    %v456 = vmax.f32 %v440, 0.0
    %v457 = vmax.f32 %v442, 0.0
    %v458 = vmax.f32 %v446, 0.0
    %v459 = vmax.f32 %v448, 0.0
    %v460 = vmax.f32 %v450, 0.0
    %v461 = vmax.f32 %v452, 0.0
    %v462 = vpack.c.bf16 %v456, %v454
    %v463 = vpack.c.bf16 %v457, %v455
    %v464 = vpack.c.bf16 %v460, %v458
    %v465 = vpack.c.bf16 %v461, %v459
    %v466 = vld [vmem:[#allocation8] sm:$0xf]
    %v467 = vld [vmem:[#allocation8 + $0x4] sm:$0xf]
    %v468 = vld [vmem:[#allocation8 + $0x8] sm:$0xf]
    %v469 = vld [vmem:[#allocation8 + $0xc] sm:$0xf]
    %v470 = vld [vmem:[#allocation8 + $0x10] sm:$0xf]
    %v471 = vld [vmem:[#allocation8 + $0x14] sm:$0xf]
    %v472 = vld [vmem:[#allocation8 + $0x18] sm:$0xf]
    %v473 = vld [vmem:[#allocation8 + $0x1c] sm:$0xf]
    %v474 = vld [vmem:[#allocation8 + $0x20] sm:$0xf]
    %v475 = vld [vmem:[#allocation8 + $0x24] sm:$0xf]
    %v476 = vld [vmem:[#allocation8 + $0x28] sm:$0xf]
    %v477 = vld [vmem:[#allocation8 + $0x2c] sm:$0xf]
    %v478 = vld [vmem:[#allocation8 + $0x30] sm:$0xf]
    %v479 = vld [vmem:[#allocation8 + $0x34] sm:$0xf]
    %v480 = vld [vmem:[#allocation8 + $0x38] sm:$0xf]
    %v481 = vld [vmem:[#allocation8 + $0x3c] sm:$0xf]
    %v482 = vld [vmem:[#allocation8 + $0x40] sm:$0xf]
    %v483 = vld [vmem:[#allocation8 + $0x44] sm:$0xf]
    %v484 = vld [vmem:[#allocation8 + $0x48] sm:$0xf]
    %v485 = vld [vmem:[#allocation8 + $0x4c] sm:$0xf]
    %v486 = vld [vmem:[#allocation8 + $0x50] sm:$0xf]
    %v487 = vld [vmem:[#allocation8 + $0x54] sm:$0xf]
    %v488 = vld [vmem:[#allocation8 + $0x58] sm:$0xf]
    %v489 = vld [vmem:[#allocation8 + $0x5c] sm:$0xf]
    %v490 = vld [vmem:[#allocation8 + $0x60] sm:$0xf]
    %v491 = vld [vmem:[#allocation8 + $0x64] sm:$0xf]
    %v492 = vld [vmem:[#allocation8 + $0x68] sm:$0xf]
    %v493 = vld [vmem:[#allocation8 + $0x6c] sm:$0xf]
    %v494 = vld [vmem:[#allocation8 + $0x70] sm:$0xf]
    %v495 = vld [vmem:[#allocation8 + $0x74] sm:$0xf]
    %v496 = vld [vmem:[#allocation8 + $0x78] sm:$0xf]
    %v497 = vld [vmem:[#allocation8 + $0x7c] sm:$0xf]
    %v498 = vld [vmem:[%s6] sm:$0x1]
    %v500 = vlaneseq
    %v501 = vshrl.u32 %v500, 7
    %v502 = vsub.s32 0, %v501
    %v503 = vrot.slane %v498, %v502
    %v537 = vunpack.c.l.b16 %v466
    %v538 = vunpack.c.l.b16 %v467
    %v539 = vunpack.c.l.b16 %v468
    %v540 = vunpack.c.l.b16 %v469
    %v541 = vunpack.c.l.b16 %v470
    %v542 = vunpack.c.l.b16 %v471
    %v543 = vunpack.c.l.b16 %v472
    %v544 = vunpack.c.l.b16 %v473
    %v545 = vunpack.c.l.b16 %v474
    %v546 = vunpack.c.l.b16 %v475
    %v547 = vunpack.c.l.b16 %v476
    %v548 = vunpack.c.l.b16 %v477
    %v549 = vunpack.c.l.b16 %v478
    %v550 = vunpack.c.l.b16 %v479
    %v551 = vunpack.c.l.b16 %v480
    %v552 = vunpack.c.l.b16 %v481
    %v553 = vunpack.c.l.b16 %v482
    %v554 = vunpack.c.l.b16 %v483
    %v555 = vunpack.c.l.b16 %v484
    %v556 = vunpack.c.l.b16 %v485
    %v557 = vunpack.c.l.b16 %v486
    %v558 = vunpack.c.l.b16 %v487
    %v559 = vunpack.c.l.b16 %v488
    %v560 = vunpack.c.l.b16 %v489
    %v561 = vunpack.c.l.b16 %v490
    %v562 = vunpack.c.l.b16 %v491
    %v563 = vunpack.c.l.b16 %v492
    %v564 = vunpack.c.l.b16 %v493
    %v565 = vunpack.c.l.b16 %v494
    %v566 = vunpack.c.l.b16 %v495
    %v567 = vunpack.c.l.b16 %v496
    %v568 = vunpack.c.l.b16 %v497
    %v569 = vpack.c.b16 %v538, %v537
    %v570 = vpack.c.b16 %v540, %v539
    %v571 = vpack.c.b16 %v542, %v541
    %v572 = vpack.c.b16 %v544, %v543
    %v573 = vpack.c.b16 %v546, %v545
    %v574 = vpack.c.b16 %v548, %v547
    %v575 = vpack.c.b16 %v550, %v549
    %v576 = vpack.c.b16 %v552, %v551
    %v577 = vpack.c.b16 %v554, %v553
    %v578 = vpack.c.b16 %v556, %v555
    %v579 = vpack.c.b16 %v558, %v557
    %v580 = vpack.c.b16 %v560, %v559
    %v581 = vpack.c.b16 %v562, %v561
    %v582 = vpack.c.b16 %v564, %v563
    %v583 = vpack.c.b16 %v566, %v565
    %v584 = vpack.c.b16 %v568, %v567
    %601 = vmatprep.subr.bf16.mxu0 0
    %602 = vmatpush1.bf16.msra.mxu0 %v569
    %603 = vmatprep.subr.bf16.mxu0 0
    %604 = vmatpush1.bf16.msra.mxu0 %v570
    %605 = vmatprep.subr.bf16.mxu0 0
    %606 = vmatpush1.bf16.msra.mxu0 %v571
    %607 = vmatprep.subr.bf16.mxu0 0
    %608 = vmatpush1.bf16.msra.mxu0 %v572
    %609 = vmatprep.subr.bf16.mxu0 0
    %610 = vmatpush1.bf16.msra.mxu0 %v573
    %611 = vmatprep.subr.bf16.mxu0 0
    %612 = vmatpush1.bf16.msra.mxu0 %v574
    %613 = vmatprep.subr.bf16.mxu0 0
    %614 = vmatpush1.bf16.msra.mxu0 %v575
    %615 = vmatprep.subr.bf16.mxu0 0
    %616 = vmatpush1.bf16.msra.mxu0 %v576
    %617 = vmatprep.subr.bf16.mxu0 0
    %618 = vmatpush1.bf16.msra.mxu0 %v577
    %619 = vmatprep.subr.bf16.mxu0 0
    %620 = vmatpush1.bf16.msra.mxu0 %v578
    %621 = vmatprep.subr.bf16.mxu0 0
    %622 = vmatpush1.bf16.msra.mxu0 %v579
    %623 = vmatprep.subr.bf16.mxu0 0
    %624 = vmatpush1.bf16.msra.mxu0 %v580
    %625 = vmatprep.subr.bf16.mxu0 0
    %626 = vmatpush1.bf16.msra.mxu0 %v581
    %627 = vmatprep.subr.bf16.mxu0 0
    %628 = vmatpush1.bf16.msra.mxu0 %v582
    %629 = vmatprep.subr.bf16.mxu0 0
    %630 = vmatpush1.bf16.msra.mxu0 %v583
    %631 = vmatprep.subr.bf16.mxu0 0
    %632 = vmatpush1.bf16.msra.mxu0 %v584
    %633 = vmatprep.mubr.bf16.mxu0 %v463
    %634 = vmatmul.mubr.bf16.gmra.mrb[0].mxu0 %v462
    %v635 = vpop.f32.mrb[0].mxu0
    %v636 = vadd.f32 %v503, %v635
    %v637 = vpop.f32.mrb[0].mxu0
    %v638 = vpop.f32.mrb[0].mxu0
    %v639 = vadd.f32 %v503, %v638
    %v640 = vpop.f32.mrb[0].mxu0
    %641 = vmatprep.mubr.bf16.mxu0 %v465
    %642 = vmatmul.mubr.bf16.gmra.mrb[0].mxu0 %v464
    %v643 = vpop.f32.mrb[0].mxu0
    %v644 = vadd.f32 %v503, %v643
    %v645 = vpop.f32.mrb[0].mxu0
    %v646 = vpop.f32.mrb[0].mxu0
    %v647 = vadd.f32 %v503, %v646
    %v648 = vpop.f32.mrb[0].mxu0
    %649 = vdwg.mxu0
    %v650 = vpack.c.bf16 %v639, %v636
    %v651 = vpack.c.bf16 %v647, %v644
    %v654 = vunpack.c.l.b16 %v650
    %v655 = vunpack.c.h.b16 %v650
    %v656 = vunpack.c.l.b16 %v651
    %v657 = vunpack.c.h.b16 %v651
    %v658 = vpack.c.b16 %v654, %v654
    %v659 = vpack.c.b16 %v655, %v655
    %v660 = vpack.c.b16 %v656, %v656
    %v661 = vpack.c.b16 %v657, %v657
    %666 = vst [vmem:[#allocation10] sm:$0xf] %v658
    %667 = vst [vmem:[#allocation10 + $0x4] sm:$0xf] %v659
    %668 = vst [vmem:[#allocation10 + $0x8] sm:$0xf] %v660
    %669 = vst [vmem:[#allocation10 + $0xc] sm:$0xf] %v661
    // Predicated region
    $region46: #{tpu_custom_call.1} parent=1 // pred_check
      _
    $region47: #{tpu_custom_call.1} parent=1 // pred_check_branch
      %671 = sbr.rel (0) target = $region49
    $region48: #{tpu_custom_call.1} parent=1 // pred_region
      %s673 = ssub.s32 256, 256
      %674 = vsyncadd [#allocation4], %s673
      %s675 = sshll.u32 [#allocation10], 4
      %s676 = int_to_ptr.vmem [resolvable:$true] %s675
      %681 = dma.vmem_to_hbm [thread:$0]  %s676, 256, %s7, [#allocation4], 64, 64, 4
    $region49: #{tpu_custom_call.1} parent=1 // pred_fallthru
      _
    // Predicated region
    $region50: #{tpu_custom_call.1} parent=1 // pred_check
      _
    $region51: #{tpu_custom_call.1} parent=1 // pred_check_branch
      %683 = sbr.rel (0) target = $region53
    $region52: #{tpu_custom_call.1} parent=1 // pred_region
      %684 = dma.done [#allocation4], 256
    $region53: #{tpu_custom_call.1} parent=1 // pred_fallthru
      _
    %685 = vsyncpa [#allocation3], 1
    %686 = vsyncpa [#allocation6], 1
    %687 = vsyncpa [#allocation9], 1
    %688 = vsyncpa [#allocation4], 1

</llo_original>
